<compile_context>
chip_gen: v5e
topology: v5e:2x2
jax: 0.10.0
libtpu: 0.0.40
codegen_flags: <defaults>
</compile_context>

<pallas_src>
import functools
import math
import jax
import jax.numpy as jnp
from jax.experimental import pallas as pl
from jax.experimental.pallas import tpu as pltpu


def _round_up(v, m):
    return ((v + m - 1) // m) * m


def _bf16_eltwise_supported():
    # v6e / v7x have a bf16 VPU + EUP; v5e (and earlier) do not -> keep f32.
    try:
        kind = jax.devices()[0].device_kind.lower()
    except Exception:
        return False
    return any(tag in kind for tag in ("v6", "v7", "7x"))


# ----------------------------- Pallas kernel --------------------------------
def enhanced_dnn_kernel(xt_ref, cc_ref, w_in_ref, w2_ref, b2_ref, out_ref,
                        *, bf16_eltwise):
    xe_pad = xt_ref.shape[1]          # i_pad + e_pad (rows of the x|time slab)

    # feature_attn branch: softmax over the item axis (f32 math; pad lanes hold
    # -1e30 so exp underflows to exactly 0 and padding is inert).
    cc = cc_ref[...].astype(jnp.float32)
    cc_max = jnp.max(cc, axis=1, keepdims=True)
    e = jnp.exp(cc - cc_max)
    # approx reciprocal runs on the (free) EUP slot; the ~1e-3-level relative
    # error on the softmax normalization is intentional and far inside the
    # bf16-MXU tolerance (use approx=False if tighter accuracy is needed).
    attn = e * pl.reciprocal(jnp.sum(e, axis=1, keepdims=True), approx=True)

    # Fused in_layers[0]:  pre = [x | time_feat | 1] @ W_xe  +  attn @ W_co
    # (emb_layer / co_count_proj / b1 folded host-side; both weight slices are
    #  128-aligned views of the packed slab).
    pre = jnp.dot(xt_ref[...], w_in_ref[:xe_pad, :],
                  preferred_element_type=jnp.float32)
    pre = pre + jnp.dot(attn.astype(jnp.bfloat16), w_in_ref[xe_pad:, :],
                        preferred_element_type=jnp.float32)

    # tanh on the EUP: bf16 on v6e/v7x (halves EUP pushes), f32 on v5e.
    if bf16_eltwise:
        h = jnp.tanh(pre.astype(jnp.bfloat16))
    else:
        h = jnp.tanh(pre).astype(jnp.bfloat16)

    # out_layers[0] (last layer -> no tanh).  Output tile is lane-dense.
    out = (jnp.dot(h, w2_ref[...], preferred_element_type=jnp.float32)
           + b2_ref[...])
    out_ref[...] = out.astype(out_ref.dtype)


# ------------------------------ JAX wrapper ----------------------------------
def enhanced_dnn_forward(x, timesteps, co_counts, packed, emb_size,
                         out_dtype=jnp.float32):
    B, n_items = x.shape
    w_in, w2, b2 = packed["w_in"], packed["w2"], packed["b2"]
    h_pad, i_pad = w2.shape
    e_pad = w_in.shape[0] - 2 * i_pad
    xe_pad = i_pad + e_pad
    half = emb_size // 2

    # Batch tile: multiple of 16 (bf16 sublane packing).  Medium/large batches
    # get >= 2 grid steps so "parallel" can shard the batch axis across v7x's
    # two TensorCores.  (Sweep TB=512/1024 on v6e for very large batches.)
    if B >= 512:
        TB = 256
    elif B >= 32:
        TB = min(256, _round_up((B + 1) // 2, 16))
    else:
        TB = _round_up(B, 16)
    B_pad = _round_up(B, TB)

    # ---- host-side glue: one fused concat/pad per operand ----
    # Sinusoidal time features (+ zero column for odd emb_size, matching the
    # torch timestep_embedding) + the ones column that carries the fused bias.
    freqs = jnp.exp(-math.log(10000.0)
                    * jnp.arange(half, dtype=jnp.float32) / half)
    args = timesteps.astype(jnp.float32)[:, None] * freqs[None, :]
    te_parts = [jnp.cos(args), jnp.sin(args)]
    if emb_size % 2:
        te_parts.append(jnp.zeros((B, 1), jnp.float32))
    te_parts.append(jnp.ones((B, 1), jnp.float32))       # bias column -> b1' row
    te_parts.append(jnp.zeros((B, e_pad - emb_size - 1), jnp.float32))

    # Merged [x | pad | time_feat] operand: one bf16 DMA stream, one MXU
    # contraction in the kernel.  Padded columns hit zero weight rows.
    xt = jnp.concatenate(
        [x.astype(jnp.float32),
         jnp.zeros((B, i_pad - n_items), jnp.float32)] + te_parts,
        axis=1).astype(jnp.bfloat16)
    xt = jnp.pad(xt, ((0, B_pad - B), (0, 0)))

    # co_counts shipped as bf16 (halves the largest input DMA); -1e30 pad keeps
    # the in-kernel softmax inert on pad lanes / pad batch rows.
    cc = jnp.pad(co_counts.astype(jnp.bfloat16),
                 ((0, B_pad - B), (0, i_pad - n_items)),
                 constant_values=-1e30)

    # Explicit VMEM budget: double-buffered tiles + resident weights + out tile
    # + headroom, clamped under v7x's 64 MiB physical VMEM.
    out_itemsize = jnp.dtype(out_dtype).itemsize
    est = 2 * (TB * xe_pad * 2 + TB * i_pad * 2                # xt, cc tiles
               + w_in.size * 2 + w2.size * 2 + 8 * i_pad * 4   # weights
               + TB * i_pad * out_itemsize)                    # out tile
    vmem_limit = int(min(max(est + (8 << 20), 16 << 20), 64 << 20))

    kernel = functools.partial(enhanced_dnn_kernel,
                               bf16_eltwise=_bf16_eltwise_supported())

    out = pl.pallas_call(
        kernel,
        out_shape=jax.ShapeDtypeStruct((B_pad, i_pad), out_dtype),
        grid_spec=pltpu.PrefetchScalarGridSpec(
            num_scalar_prefetch=0,
            grid=(B_pad // TB,),
            in_specs=[
                pl.BlockSpec((TB, xe_pad), lambda i: (i, 0)),   # [x | time] tile
                pl.BlockSpec((TB, i_pad), lambda i: (i, 0)),    # co_counts tile
                # Resident weights (constant index_map).
                # TODO(synk): at larger n_items/hidden add
                # pipeline_mode=pl.Buffered(1) here to single-buffer resident
                # weights and halve their VMEM footprint on v7x.
                pl.BlockSpec((2 * i_pad + e_pad, h_pad), lambda i: (0, 0)),
                pl.BlockSpec((h_pad, i_pad), lambda i: (0, 0)),
                pl.BlockSpec((1, i_pad), lambda i: (0, 0)),
            ],
            out_specs=pl.BlockSpec((TB, i_pad), lambda i: (i, 0)),
        ),
        compiler_params=pltpu.CompilerParams(
            dimension_semantics=("parallel",),
            vmem_limit_bytes=vmem_limit),
    )(xt, cc, w_in, w2, b2)
    return out[:B, :n_items]


# -------------------------- parameter construction ---------------------------
def make_params(key, n_items, hidden, emb_size):
    """Synthetic init mirroring EnhancedDNN.init_weights:
    normal(0, sqrt(2/(fan_in+fan_out))) weights, normal(0, 0.001) biases.
    Weights are generated directly in transposed (in, out) layout."""
    ks = jax.random.split(key, 8)
    I, H, E = n_items, hidden, emb_size

    def w(k, fan_in, fan_out):
        std = math.sqrt(2.0 / (fan_in + fan_out))
        return jax.random.normal(k, (fan_in, fan_out), jnp.float32) * std

    def b(k, dim):
        return jax.random.normal(k, (dim,), jnp.float32) * 0.001

    return {
        "wemb_t": w(ks[0], E, E), "bemb": b(ks[1], E),       # emb_layer
        "wco_t": w(ks[2], I, E),  "bco": b(ks[3], E),        # co_count_proj
        "w1_t": w(ks[4], I + 2 * E, H), "b1": b(ks[5], H),   # in_layers[0]
        "w2_t": w(ks[6], H, I),   "b2": b(ks[7], I),         # out_layers[0]
    }


def pack_params(params, n_items, hidden, emb_size):
    """Host-side algebraic fusion + 128-lane padding + bf16 cast."""
    I, H, E = n_items, hidden, emb_size
    i_pad = _round_up(I, 128)
    h_pad = _round_up(H, 128)
    e_pad = _round_up(E + 1, 128)      # +1 row for the fused bias b1'

    w1x = params["w1_t"][:I]                      # (I, H)
    w1e = params["w1_t"][I:I + E]                 # (E, H)
    w1c = params["w1_t"][I + E:]                  # (E, H)

    AB = params["wemb_t"] @ w1e                   # (E, H)  emb_layer folded in
    C = params["wco_t"] @ w1c                     # (I, H)  co_count_proj folded in
    b1f = params["b1"] + params["bemb"] @ w1e + params["bco"] @ w1c   # (H,)

    w_in = jnp.zeros((2 * i_pad + e_pad, h_pad), jnp.float32)
    w_in = w_in.at[:I, :H].set(w1x)
    w_in = w_in.at[i_pad:i_pad + E, :H].set(AB)
    w_in = w_in.at[i_pad + E, :H].set(b1f)                       # bias row
    w_in = w_in.at[i_pad + e_pad:i_pad + e_pad + I, :H].set(C)

    w2 = jnp.zeros((h_pad, i_pad), jnp.float32).at[:H, :I].set(params["w2_t"])
    b2 = jnp.zeros((1, i_pad), jnp.float32).at[0, :I].set(params["b2"])

    return {"w_in": w_in.astype(jnp.bfloat16),
            "w2": w2.astype(jnp.bfloat16),
            "b2": b2}


# --------------------------- pure-JAX reference -------------------------------
def reference_forward(x, timesteps, co_counts, params, emb_size):
    half = emb_size // 2
    freqs = jnp.exp(-math.log(10000.0)
                    * jnp.arange(half, dtype=jnp.float32) / half)
    args = timesteps.astype(jnp.float32)[:, None] * freqs[None, :]
    time_emb = jnp.concatenate([jnp.cos(args), jnp.sin(args)], axis=-1)
    emb = time_emb @ params["wemb_t"] + params["bemb"]
    attn = jax.nn.softmax(co_counts, axis=1)
    co_emb = attn @ params["wco_t"] + params["bco"]
    h = jnp.concatenate([x, emb, co_emb], axis=-1)
    h = jnp.tanh(h @ params["w1_t"] + params["b1"])
    return h @ params["w2_t"] + params["b2"]


if __name__ == "__main__":
    # Module config: in_dims=[64, 32], out_dims=[32, 64], emb_size=16
    batch, n_items, hidden, emb_size = 8, 64, 32, 16

    key = jax.random.PRNGKey(0)
    k_x, k_t, k_cc, k_p = jax.random.split(key, 4)

    x = (jax.random.uniform(k_x, (batch, n_items)) > 0.5).astype(jnp.float32)
    timesteps = jax.random.randint(k_t, (batch,), 0, 1000).astype(jnp.float32)
    co_counts = jax.random.uniform(k_cc, (batch, n_items), jnp.float32) * 5.0

    params = make_params(k_p, n_items, hidden, emb_size)
    packed = pack_params(params, n_items, hidden, emb_size)

    out = enhanced_dnn_forward(x, timesteps, co_counts, packed, emb_size)
    out = jax.block_until_ready(out)

    ref = reference_forward(x, timesteps, co_counts, params, emb_size)
    assert out.shape == (batch, n_items)
    # bf16 MXU operands / bf16 co_counts (f32 accumulation) -> tolerance is
    # loosened vs the exact-f32 reference.
    assert jnp.allclose(out, ref, atol=6e-2, rtol=6e-2), "mismatch vs reference"

    print("KERNEL_OK")
</pallas_src>

<mosaic_0001>
module attributes {stable_mosaic.version = 11 : i64} {
  func.func @enhanced_dnn_kernel(%arg0: i32, %arg1: memref<16x256xbf16, #tpu.memory_space<vmem>>, %arg2: memref<16x128xbf16, #tpu.memory_space<vmem>>, %arg3: memref<384x128xbf16, #tpu.memory_space<vmem>>, %arg4: memref<128x128xbf16, #tpu.memory_space<vmem>>, %arg5: memref<1x128xf32, #tpu.memory_space<vmem>>, %arg6: memref<16x128xf32, #tpu.memory_space<vmem>>) attributes {dimension_semantics = [#tpu.dimension_semantics<parallel>], iteration_bounds = array<i64: 1>, scalar_prefetch = 0 : i64, scratch_operands = 0 : i64, tpu.core_type = #tpu.core_type<tc>, window_params = [{transform_indices = @transform_0, window_bounds = array<i64: 16, 256>}, {transform_indices = @transform_1, window_bounds = array<i64: 16, 128>}, {pipeline_mode = #tpu.pipeline_mode<synchronous>, transform_indices = @transform_2, window_bounds = array<i64: 384, 128>}, {pipeline_mode = #tpu.pipeline_mode<synchronous>, transform_indices = @transform_3, window_bounds = array<i64: 128, 128>}, {pipeline_mode = #tpu.pipeline_mode<synchronous>, transform_indices = @transform_4, window_bounds = array<i64: 1, 128>}, {transform_indices = @transform_5, window_bounds = array<i64: 16, 128>}]} {
    %c0 = arith.constant 0 : index
    %c0_0 = arith.constant 0 : index
    %0 = vector.load %arg2[%c0, %c0_0] : memref<16x128xbf16, #tpu.memory_space<vmem>>, vector<16x128xbf16>
    %1 = arith.extf %0 : vector<16x128xbf16> to vector<16x128xf32>
    %cst = arith.constant dense<0xFF800000> : vector<16xf32>
    %2 = vector.multi_reduction <maximumf>, %1, %cst [1] : vector<16x128xf32> to vector<16xf32>
    %3 = vector.shape_cast %2 : vector<16xf32> to vector<16x1xf32>
    %4 = vector.broadcast %3 : vector<16x1xf32> to vector<16x128xf32>
    %5 = arith.subf %1, %4 : vector<16x128xf32>
    %6 = math.exp %5 : vector<16x128xf32>
    %cst_1 = arith.constant dense<0.000000e+00> : vector<16xf32>
    %7 = vector.multi_reduction <add>, %6, %cst_1 [1] : vector<16x128xf32> to vector<16xf32>
    %8 = vector.shape_cast %7 : vector<16xf32> to vector<16x1xf32>
    %9 = tpu.reciprocal %8 {approx = true} : vector<16x1xf32> -> vector<16x1xf32>
    %10 = vector.broadcast %9 : vector<16x1xf32> to vector<16x128xf32>
    %11 = arith.mulf %6, %10 : vector<16x128xf32>
    %c0_2 = arith.constant 0 : index
    %c0_3 = arith.constant 0 : index
    %12 = vector.load %arg1[%c0_2, %c0_3] : memref<16x256xbf16, #tpu.memory_space<vmem>>, vector<16x256xbf16>
    %c0_4 = arith.constant 0 : index
    %c0_5 = arith.constant 0 : index
    %13 = vector.load %arg3[%c0_4, %c0_5] : memref<384x128xbf16, #tpu.memory_space<vmem>>, vector<256x128xbf16>
    %cst_6 = arith.constant dense<0.000000e+00> : vector<16x128xf32>
    %14 = tpu.matmul %12, %13, %cst_6 {dimension_numbers = #tpu.dot_dimension_numbers<[1], [0], [0], [1], [0, 0, 1, 1], [], []>} : vector<16x256xbf16>, vector<256x128xbf16>, vector<16x128xf32> -> vector<16x128xf32>
    %15 = arith.truncf %11 : vector<16x128xf32> to vector<16x128xbf16>
    %c256 = arith.constant 256 : index
    %c0_7 = arith.constant 0 : index
    %16 = vector.load %arg3[%c256, %c0_7] : memref<384x128xbf16, #tpu.memory_space<vmem>>, vector<128x128xbf16>
    %cst_8 = arith.constant dense<0.000000e+00> : vector<16x128xf32>
    %17 = tpu.matmul %15, %16, %cst_8 {dimension_numbers = #tpu.dot_dimension_numbers<[1], [0], [0], [1], [0, 0, 1, 1], [], []>} : vector<16x128xbf16>, vector<128x128xbf16>, vector<16x128xf32> -> vector<16x128xf32>
    %18 = arith.addf %14, %17 : vector<16x128xf32>
    %19 = math.tanh %18 : vector<16x128xf32>
    %20 = arith.truncf %19 : vector<16x128xf32> to vector<16x128xbf16>
    %c0_9 = arith.constant 0 : index
    %c0_10 = arith.constant 0 : index
    %21 = vector.load %arg4[%c0_9, %c0_10] : memref<128x128xbf16, #tpu.memory_space<vmem>>, vector<128x128xbf16>
    %cst_11 = arith.constant dense<0.000000e+00> : vector<16x128xf32>
    %22 = tpu.matmul %20, %21, %cst_11 {dimension_numbers = #tpu.dot_dimension_numbers<[1], [0], [0], [1], [0, 0, 1, 1], [], []>} : vector<16x128xbf16>, vector<128x128xbf16>, vector<16x128xf32> -> vector<16x128xf32>
    %c0_12 = arith.constant 0 : index
    %c0_13 = arith.constant 0 : index
    %23 = vector.load %arg5[%c0_12, %c0_13] : memref<1x128xf32, #tpu.memory_space<vmem>>, vector<1x128xf32>
    %24 = vector.broadcast %23 : vector<1x128xf32> to vector<16x128xf32>
    %25 = arith.addf %22, %24 : vector<16x128xf32>
    %c0_14 = arith.constant 0 : index
    %c0_15 = arith.constant 0 : index
    %26 = vector.load %arg6[%c0_14, %c0_15] : memref<16x128xf32, #tpu.memory_space<vmem>>, vector<16x128xf32>
    tpu.vector_store %arg6[%c0_14, %c0_15], %25 {strides = array<i32>} : memref<16x128xf32, #tpu.memory_space<vmem>>, vector<16x128xf32>,
    return
  }
  func.func @transform_0(%arg0: i32) -> (i32, i32) {
    %c0_i32 = arith.constant 0 : i32
    %c0_i32_0 = arith.constant 0 : i32
    return %arg0, %c0_i32 : i32, i32
  }
  func.func @transform_1(%arg0: i32) -> (i32, i32) {
    %c0_i32 = arith.constant 0 : i32
    %c0_i32_0 = arith.constant 0 : i32
    return %arg0, %c0_i32 : i32, i32
  }
  func.func @transform_2(%arg0: i32) -> (i32, i32) {
    %c0_i32 = arith.constant 0 : i32
    %c0_i32_0 = arith.constant 0 : i32
    %c0_i32_1 = arith.constant 0 : i32
    return %c0_i32, %c0_i32_0 : i32, i32
  }
  func.func @transform_3(%arg0: i32) -> (i32, i32) {
    %c0_i32 = arith.constant 0 : i32
    %c0_i32_0 = arith.constant 0 : i32
    %c0_i32_1 = arith.constant 0 : i32
    return %c0_i32, %c0_i32_0 : i32, i32
  }
  func.func @transform_4(%arg0: i32) -> (i32, i32) {
    %c0_i32 = arith.constant 0 : i32
    %c0_i32_0 = arith.constant 0 : i32
    %c0_i32_1 = arith.constant 0 : i32
    return %c0_i32, %c0_i32_0 : i32, i32
  }
  func.func @transform_5(%arg0: i32) -> (i32, i32) {
    %c0_i32 = arith.constant 0 : i32
    %c0_i32_0 = arith.constant 0 : i32
    return %arg0, %c0_i32 : i32, i32
  }
}

</mosaic_0001>

<llo_original>
// kernel: tpu_custom_call.1
$region0: #{tpu_custom_call.1}
  #allocation0 [shape = 'u32[]', space=smem, size = 0x4, offset = 0x4, fixed_abs, tag = 'smem constant byte address 0x4 - core index']
  #allocation1 [shape = 'u32[72,128]{1,0:T(1,128)}', space=vmem, size = 0x9000, scoped, tag = 'internal scratch']
  %s0 = inlined_call_operand.hbm [shape: bf16[16,256], index: 0, kind: input, shape index: {}]
  %s1 = inlined_call_operand.hbm [shape: bf16[16,128], index: 1, kind: input, shape index: {}]
  %s2 = inlined_call_operand.hbm [shape: bf16[384,128], index: 2, kind: input, shape index: {}]
  %s3 = inlined_call_operand.hbm [shape: bf16[128,128], index: 3, kind: input, shape index: {}]
  %s4 = inlined_call_operand.vmem [shape: f32[1,128], index: 4, kind: input, shape index: {}]
  %s5 = inlined_call_operand.hbm [shape: f32[16,128], index: 5, kind: output, shape index: {}]
  %s6 = sld [smem:[#allocation0]]
  $region46: #{tpu_custom_call.1} parent=0
    _
  %s8 = ssub.s32 1, %s6
  %s9 = scalar_select 0, %s8, %s6
  $region1: #{tpu_custom_call.1} parent=0
    #allocation2 [shape = 'u8[8192]{0}', space=vmem, size = 0x2000, scoped, tag = 'input window, operand 0, single buffered']
    #allocation3 [shape = 's32[1]{0}', space=sflag, size = 0x4, scoped, tag = 'scoped memory for tpu_custom_call.1']
    #allocation4 [shape = 's32[1]{0}', space=sflag, size = 0x4, scoped, tag = 'scoped memory for tpu_custom_call.1']
    #allocation5 [shape = 'u8[4096]{0}', space=vmem, size = 0x1000, scoped, tag = 'input window, operand 1, single buffered']
    #allocation6 [shape = 's32[1]{0}', space=sflag, size = 0x4, scoped, tag = 'scoped memory for tpu_custom_call.1']
    #allocation7 [shape = 'u8[98304]{0}', space=vmem, size = 0x18000, scoped, tag = 'input window, operand 2, single buffered']
    #allocation8 [shape = 'u8[32768]{0}', space=vmem, size = 0x8000, scoped, tag = 'input window, operand 3, single buffered']
    #allocation9 [shape = 's32[1]{0}', space=sflag, size = 0x4, scoped, tag = 'scoped memory for tpu_custom_call.1']
    #allocation10 [shape = 'u8[8192]{0}', space=vmem, size = 0x2000, scoped, tag = 'output window, operand 0, single buffered']
    %10 = vsyncpa [#allocation3], 0
    %11 = vsyncpa [#allocation6], 0
    %12 = vsyncpa [#allocation9], 0
    %13 = vsyncpa [#allocation4], 0
    // Predicated region
    $region2: #{tpu_custom_call.1} parent=1 // pred_check
      _
    $region3: #{tpu_custom_call.1} parent=1 // pred_check_branch
      %15 = sbr.rel (0) target = $region5
    $region4: #{tpu_custom_call.1} parent=1 // pred_region
      %17 = vsyncadd [#allocation3], 0
      %s18 = sshll.u32 %s0, 4
      %s19 = int_to_ptr.hbm [resolvable:$true] %s18
      %s20 = sshll.u32 [#allocation2], 4
      %s21 = int_to_ptr.vmem [resolvable:$true] %s20
      %26 = dma.hbm_to_vmem [thread:$0]  %s19, 256, %s21, [#allocation3], 128, 128, 8
    $region5: #{tpu_custom_call.1} parent=1 // pred_fallthru
      _
    // Predicated region
    $region6: #{tpu_custom_call.1} parent=1 // pred_check
      _
    $region7: #{tpu_custom_call.1} parent=1 // pred_check_branch
      %28 = sbr.rel (0) target = $region9
    $region8: #{tpu_custom_call.1} parent=1 // pred_region
      %30 = vsyncadd [#allocation6], 0
      %s31 = sshll.u32 %s1, 4
      %s32 = int_to_ptr.hbm [resolvable:$true] %s31
      %s33 = sshll.u32 [#allocation5], 4
      %s34 = int_to_ptr.vmem [resolvable:$true] %s33
      %39 = dma.hbm_to_vmem [thread:$0]  %s32, 128, %s34, [#allocation6], 64, 64, 4
    $region9: #{tpu_custom_call.1} parent=1 // pred_fallthru
      _
    // Predicated region
    $region10: #{tpu_custom_call.1} parent=1 // pred_check
      _
    $region11: #{tpu_custom_call.1} parent=1 // pred_check_branch
      %41 = sbr.rel (0) target = $region13
    $region12: #{tpu_custom_call.1} parent=1 // pred_region
      %43 = vsyncadd [#allocation6], 0
      %s44 = sshll.u32 %s2, 4
      %s45 = int_to_ptr.hbm [resolvable:$true] %s44
      %s46 = sshll.u32 [#allocation7], 4
      %s47 = int_to_ptr.vmem [resolvable:$true] %s46
      %52 = dma.hbm_to_vmem [thread:$0]  %s45, 3072, %s47, [#allocation6], 64, 64, 4
    $region13: #{tpu_custom_call.1} parent=1 // pred_fallthru
      _
    // Predicated region
    $region14: #{tpu_custom_call.1} parent=1 // pred_check
      _
    $region15: #{tpu_custom_call.1} parent=1 // pred_check_branch
      %54 = sbr.rel (0) target = $region17
    $region16: #{tpu_custom_call.1} parent=1 // pred_region
      %56 = vsyncadd [#allocation9], 0
      %s57 = sshll.u32 %s3, 4
      %s58 = int_to_ptr.hbm [resolvable:$true] %s57
      %s59 = sshll.u32 [#allocation8], 4
      %s60 = int_to_ptr.vmem [resolvable:$true] %s59
      %65 = dma.hbm_to_vmem [thread:$0]  %s58, 1024, %s60, [#allocation9], 64, 64, 4
    $region17: #{tpu_custom_call.1} parent=1 // pred_fallthru
      _
    // Predicated region
    $region18: #{tpu_custom_call.1} parent=1 // pred_check
      _
    $region19: #{tpu_custom_call.1} parent=1 // pred_check_branch
      %67 = sbr.rel (0) target = $region21
    $region20: #{tpu_custom_call.1} parent=1 // pred_region
      _
    $region21: #{tpu_custom_call.1} parent=1 // pred_fallthru
      _
    // Predicated region
    $region22: #{tpu_custom_call.1} parent=1 // pred_check
      _
    $region23: #{tpu_custom_call.1} parent=1 // pred_check_branch
      %69 = sbr.rel (0) target = $region25
    $region24: #{tpu_custom_call.1} parent=1 // pred_region
      %71 = dma.done [#allocation3], 256
    $region25: #{tpu_custom_call.1} parent=1 // pred_fallthru
      _
    // Predicated region
    $region26: #{tpu_custom_call.1} parent=1 // pred_check
      _
    $region27: #{tpu_custom_call.1} parent=1 // pred_check_branch
      %73 = sbr.rel (0) target = $region29
    $region28: #{tpu_custom_call.1} parent=1 // pred_region
      %75 = dma.done [#allocation6], 128
    $region29: #{tpu_custom_call.1} parent=1 // pred_fallthru
      _
    // Predicated region
    $region30: #{tpu_custom_call.1} parent=1 // pred_check
      _
    $region31: #{tpu_custom_call.1} parent=1 // pred_check_branch
      %77 = sbr.rel (0) target = $region33
    $region32: #{tpu_custom_call.1} parent=1 // pred_region
      %79 = dma.done [#allocation6], 3072
    $region33: #{tpu_custom_call.1} parent=1 // pred_fallthru
      _
    // Predicated region
    $region34: #{tpu_custom_call.1} parent=1 // pred_check
      _
    $region35: #{tpu_custom_call.1} parent=1 // pred_check_branch
      %81 = sbr.rel (0) target = $region37
    $region36: #{tpu_custom_call.1} parent=1 // pred_region
      %83 = dma.done [#allocation9], 1024
    $region37: #{tpu_custom_call.1} parent=1 // pred_fallthru
      _
    %v84 = vld [vmem:[#allocation5] sm:$0xf]
    %v85 = vld [vmem:[#allocation5 + $0x4] sm:$0xf]
    %v86 = vunpack.c.l.bf16 %v84
    %v87 = vunpack.c.l.bf16 %v85
    %88 = vmax.xlane.f32.xlu0 %v86
    %v89 = vpop.xlane.xlu0 %88
    %90 = vmax.xlane.f32.xlu0 %v87
    %v91 = vpop.xlane.xlu0 %90
    %v92 = vsub.f32 %v86, %v89
    %v93 = vsub.f32 %v87, %v91
    %v94 = vmul.f32 %v92, 1.442695
    %v95 = vpow.pop %v94
    %v96 = vmul.f32 %v93, 1.442695
    %v97 = vpow.pop %v96
    %98 = vadd.xlane.f32.xlu0 %v95
    %v99 = vpop.xlane.xlu0 %98
    %100 = vadd.xlane.f32.xlu0 %v97
    %v101 = vpop.xlane.xlu0 %100
    %v102 = vrcp.pop %v99
    %v103 = vrcp.pop %v101
    %v104 = vmul.f32 %v95, %v102
    %v105 = vmul.f32 %v97, %v103
    %v106 = vld [vmem:[#allocation2] sm:$0xff]
    %v107 = vld [vmem:[#allocation2 + $0x8] sm:$0xff]
    %v108 = vld [vmem:[#allocation7] sm:$0xf]
    %v109 = vld [vmem:[#allocation7 + $0x4] sm:$0xf]
    %v110 = vld [vmem:[#allocation7 + $0x8] sm:$0xf]
    %v111 = vld [vmem:[#allocation7 + $0xc] sm:$0xf]
    %v112 = vld [vmem:[#allocation7 + $0x10] sm:$0xf]
    %v113 = vld [vmem:[#allocation7 + $0x14] sm:$0xf]
    %v114 = vld [vmem:[#allocation7 + $0x18] sm:$0xf]
    %v115 = vld [vmem:[#allocation7 + $0x1c] sm:$0xf]
    %v116 = vld [vmem:[#allocation7 + $0x20] sm:$0xf]
    %v117 = vld [vmem:[#allocation7 + $0x24] sm:$0xf]
    %v118 = vld [vmem:[#allocation7 + $0x28] sm:$0xf]
    %v119 = vld [vmem:[#allocation7 + $0x2c] sm:$0xf]
    %v120 = vld [vmem:[#allocation7 + $0x30] sm:$0xf]
    %v121 = vld [vmem:[#allocation7 + $0x34] sm:$0xf]
    %v122 = vld [vmem:[#allocation7 + $0x38] sm:$0xf]
    %v123 = vld [vmem:[#allocation7 + $0x3c] sm:$0xf]
    %v124 = vld [vmem:[#allocation7 + $0x40] sm:$0xf]
    %v125 = vld [vmem:[#allocation7 + $0x44] sm:$0xf]
    %v126 = vld [vmem:[#allocation7 + $0x48] sm:$0xf]
    %v127 = vld [vmem:[#allocation7 + $0x4c] sm:$0xf]
    %v128 = vld [vmem:[#allocation7 + $0x50] sm:$0xf]
    %v129 = vld [vmem:[#allocation7 + $0x54] sm:$0xf]
    %v130 = vld [vmem:[#allocation7 + $0x58] sm:$0xf]
    %v131 = vld [vmem:[#allocation7 + $0x5c] sm:$0xf]
    %v132 = vld [vmem:[#allocation7 + $0x60] sm:$0xf]
    %v133 = vld [vmem:[#allocation7 + $0x64] sm:$0xf]
    %v134 = vld [vmem:[#allocation7 + $0x68] sm:$0xf]
    %v135 = vld [vmem:[#allocation7 + $0x6c] sm:$0xf]
    %v136 = vld [vmem:[#allocation7 + $0x70] sm:$0xf]
    %v137 = vld [vmem:[#allocation7 + $0x74] sm:$0xf]
    %v138 = vld [vmem:[#allocation7 + $0x78] sm:$0xf]
    %v139 = vld [vmem:[#allocation7 + $0x7c] sm:$0xf]
    %v140 = vpack.c.bf16 %v105, %v104
    %v141 = vld [vmem:[#allocation7 + $0x80] sm:$0xf]
    %v142 = vld [vmem:[#allocation7 + $0x84] sm:$0xf]
    %v143 = vld [vmem:[#allocation7 + $0x88] sm:$0xf]
    %v144 = vld [vmem:[#allocation7 + $0x8c] sm:$0xf]
    %v145 = vld [vmem:[#allocation7 + $0x90] sm:$0xf]
    %v146 = vld [vmem:[#allocation7 + $0x94] sm:$0xf]
    %v147 = vld [vmem:[#allocation7 + $0x98] sm:$0xf]
    %v148 = vld [vmem:[#allocation7 + $0x9c] sm:$0xf]
    %v149 = vld [vmem:[#allocation7 + $0xa0] sm:$0xf]
    %v150 = vld [vmem:[#allocation7 + $0xa4] sm:$0xf]
    %v151 = vld [vmem:[#allocation7 + $0xa8] sm:$0xf]
    %v152 = vld [vmem:[#allocation7 + $0xac] sm:$0xf]
    %v153 = vld [vmem:[#allocation7 + $0xb0] sm:$0xf]
    %v154 = vld [vmem:[#allocation7 + $0xb4] sm:$0xf]
    %v155 = vld [vmem:[#allocation7 + $0xb8] sm:$0xf]
    %v156 = vld [vmem:[#allocation7 + $0xbc] sm:$0xf]
    %v173 = vunpack.c.l.b16 %v141
    %v174 = vunpack.c.l.b16 %v142
    %v175 = vunpack.c.l.b16 %v143
    %v176 = vunpack.c.l.b16 %v144
    %v177 = vunpack.c.l.b16 %v145
    %v178 = vunpack.c.l.b16 %v146
    %v179 = vunpack.c.l.b16 %v147
    %v180 = vunpack.c.l.b16 %v148
    %v181 = vunpack.c.l.b16 %v149
    %v182 = vunpack.c.l.b16 %v150
    %v183 = vunpack.c.l.b16 %v151
    %v184 = vunpack.c.l.b16 %v152
    %v185 = vunpack.c.l.b16 %v153
    %v186 = vunpack.c.l.b16 %v154
    %v187 = vunpack.c.l.b16 %v155
    %v188 = vunpack.c.l.b16 %v156
    %v189 = vpack.c.b16 %v174, %v173
    %v190 = vpack.c.b16 %v176, %v175
    %v191 = vpack.c.b16 %v178, %v177
    %v192 = vpack.c.b16 %v180, %v179
    %v193 = vpack.c.b16 %v182, %v181
    %v194 = vpack.c.b16 %v184, %v183
    %v195 = vpack.c.b16 %v186, %v185
    %v196 = vpack.c.b16 %v188, %v187
    %205 = vmatpush.bf16.msra.mxu0 %v196
    %206 = vmatpush.bf16.msra.mxu0 %v195
    %207 = vmatpush.bf16.msra.mxu0 %v194
    %208 = vmatpush.bf16.msra.mxu0 %v193
    %209 = vmatpush.bf16.msra.mxu0 %v192
    %210 = vmatpush.bf16.msra.mxu0 %v191
    %211 = vmatpush.bf16.msra.mxu0 %v190
    %212 = vmatpush.bf16.msra.mxu0 %v189
    %213 = vmatmul.bf16.gmra.mxu0 %v140
    %v214 = vpop.f32.mrf.mxu0
    %v215 = vadd.f32 0.0, %v214
    %v216 = vpop.f32.mrf.mxu0
    %v217 = vadd.f32 0.0, %v216
    %218 = vdwg.mxu0
    %v221 = vunpack.c.l.b16 %v106
    %v222 = vunpack.c.h.b16 %v106
    %v223 = vunpack.c.l.b16 %v107
    %v224 = vunpack.c.h.b16 %v107
    %v225 = vpack.c.b16 %v223, %v221
    %v226 = vpack.c.b16 %v224, %v222
    %v261 = vunpack.c.l.b16 %v108
    %v262 = vunpack.c.l.b16 %v109
    %v263 = vunpack.c.l.b16 %v110
    %v264 = vunpack.c.l.b16 %v111
    %v265 = vunpack.c.l.b16 %v112
    %v266 = vunpack.c.l.b16 %v113
    %v267 = vunpack.c.l.b16 %v114
    %v268 = vunpack.c.l.b16 %v115
    %v269 = vunpack.c.l.b16 %v116
    %v270 = vunpack.c.l.b16 %v117
    %v271 = vunpack.c.l.b16 %v118
    %v272 = vunpack.c.l.b16 %v119
    %v273 = vunpack.c.l.b16 %v120
    %v274 = vunpack.c.l.b16 %v121
    %v275 = vunpack.c.l.b16 %v122
    %v276 = vunpack.c.l.b16 %v123
    %v277 = vunpack.c.l.b16 %v124
    %v278 = vunpack.c.l.b16 %v125
    %v279 = vunpack.c.l.b16 %v126
    %v280 = vunpack.c.l.b16 %v127
    %v281 = vunpack.c.l.b16 %v128
    %v282 = vunpack.c.l.b16 %v129
    %v283 = vunpack.c.l.b16 %v130
    %v284 = vunpack.c.l.b16 %v131
    %v285 = vunpack.c.l.b16 %v132
    %v286 = vunpack.c.l.b16 %v133
    %v287 = vunpack.c.l.b16 %v134
    %v288 = vunpack.c.l.b16 %v135
    %v289 = vunpack.c.l.b16 %v136
    %v290 = vunpack.c.l.b16 %v137
    %v291 = vunpack.c.l.b16 %v138
    %v292 = vunpack.c.l.b16 %v139
    %v293 = vpack.c.b16 %v262, %v261
    %v294 = vpack.c.b16 %v264, %v263
    %v295 = vpack.c.b16 %v266, %v265
    %v296 = vpack.c.b16 %v268, %v267
    %v297 = vpack.c.b16 %v270, %v269
    %v298 = vpack.c.b16 %v272, %v271
    %v299 = vpack.c.b16 %v274, %v273
    %v300 = vpack.c.b16 %v276, %v275
    %v301 = vpack.c.b16 %v278, %v277
    %v302 = vpack.c.b16 %v280, %v279
    %v303 = vpack.c.b16 %v282, %v281
    %v304 = vpack.c.b16 %v284, %v283
    %v305 = vpack.c.b16 %v286, %v285
    %v306 = vpack.c.b16 %v288, %v287
    %v307 = vpack.c.b16 %v290, %v289
    %v308 = vpack.c.b16 %v292, %v291
    %325 = vmatpush.bf16.msra.mxu0 %v300
    %326 = vmatpush.bf16.msra.mxu0 %v299
    %327 = vmatpush.bf16.msra.mxu0 %v298
    %328 = vmatpush.bf16.msra.mxu0 %v297
    %329 = vmatpush.bf16.msra.mxu0 %v296
    %330 = vmatpush.bf16.msra.mxu0 %v295
    %331 = vmatpush.bf16.msra.mxu0 %v294
    %332 = vmatpush.bf16.msra.mxu0 %v293
    %333 = vmatmul.bf16.gmra.mxu0 %v225
    %v334 = vpop.f32.mrf.mxu0
    %v335 = vadd.f32 %v215, %v334
    %v336 = vpop.f32.mrf.mxu0
    %v337 = vadd.f32 %v217, %v336
    %338 = vdwg.mxu0
    %339 = vmatpush.bf16.msra.mxu0 %v308
    %340 = vmatpush.bf16.msra.mxu0 %v307
    %341 = vmatpush.bf16.msra.mxu0 %v306
    %342 = vmatpush.bf16.msra.mxu0 %v305
    %343 = vmatpush.bf16.msra.mxu0 %v304
    %344 = vmatpush.bf16.msra.mxu0 %v303
    %345 = vmatpush.bf16.msra.mxu0 %v302
    %346 = vmatpush.bf16.msra.mxu0 %v301
    %347 = vmatmul.bf16.gmra.mxu0 %v226
    %v348 = vpop.f32.mrf.mxu0
    %v349 = vadd.f32 %v335, %v348
    %v350 = vpop.f32.mrf.mxu0
    %v351 = vadd.f32 %v337, %v350
    %352 = vdwg.mxu0
    %v353 = vtanh.pop %v349
    %v354 = vtanh.pop %v351
    %v355 = vpack.c.bf16 %v354, %v353
    %v356 = vld [vmem:[#allocation8] sm:$0xf]
    %v357 = vld [vmem:[#allocation8 + $0x4] sm:$0xf]
    %v358 = vld [vmem:[#allocation8 + $0x8] sm:$0xf]
    %v359 = vld [vmem:[#allocation8 + $0xc] sm:$0xf]
    %v360 = vld [vmem:[#allocation8 + $0x10] sm:$0xf]
    %v361 = vld [vmem:[#allocation8 + $0x14] sm:$0xf]
    %v362 = vld [vmem:[#allocation8 + $0x18] sm:$0xf]
    %v363 = vld [vmem:[#allocation8 + $0x1c] sm:$0xf]
    %v364 = vld [vmem:[#allocation8 + $0x20] sm:$0xf]
    %v365 = vld [vmem:[#allocation8 + $0x24] sm:$0xf]
    %v366 = vld [vmem:[#allocation8 + $0x28] sm:$0xf]
    %v367 = vld [vmem:[#allocation8 + $0x2c] sm:$0xf]
    %v368 = vld [vmem:[#allocation8 + $0x30] sm:$0xf]
    %v369 = vld [vmem:[#allocation8 + $0x34] sm:$0xf]
    %v370 = vld [vmem:[#allocation8 + $0x38] sm:$0xf]
    %v371 = vld [vmem:[#allocation8 + $0x3c] sm:$0xf]
    %v372 = vld [vmem:[%s4] sm:$0x1]
    %v374 = vperm.slane %v372, 0
    %v392 = vunpack.c.l.b16 %v356
    %v393 = vunpack.c.l.b16 %v357
    %v394 = vunpack.c.l.b16 %v358
    %v395 = vunpack.c.l.b16 %v359
    %v396 = vunpack.c.l.b16 %v360
    %v397 = vunpack.c.l.b16 %v361
    %v398 = vunpack.c.l.b16 %v362
    %v399 = vunpack.c.l.b16 %v363
    %v400 = vunpack.c.l.b16 %v364
    %v401 = vunpack.c.l.b16 %v365
    %v402 = vunpack.c.l.b16 %v366
    %v403 = vunpack.c.l.b16 %v367
    %v404 = vunpack.c.l.b16 %v368
    %v405 = vunpack.c.l.b16 %v369
    %v406 = vunpack.c.l.b16 %v370
    %v407 = vunpack.c.l.b16 %v371
    %v408 = vpack.c.b16 %v393, %v392
    %v409 = vpack.c.b16 %v395, %v394
    %v410 = vpack.c.b16 %v397, %v396
    %v411 = vpack.c.b16 %v399, %v398
    %v412 = vpack.c.b16 %v401, %v400
    %v413 = vpack.c.b16 %v403, %v402
    %v414 = vpack.c.b16 %v405, %v404
    %v415 = vpack.c.b16 %v407, %v406
    %424 = vmatpush.bf16.msra.mxu0 %v415
    %425 = vmatpush.bf16.msra.mxu0 %v414
    %426 = vmatpush.bf16.msra.mxu0 %v413
    %427 = vmatpush.bf16.msra.mxu0 %v412
    %428 = vmatpush.bf16.msra.mxu0 %v411
    %429 = vmatpush.bf16.msra.mxu0 %v410
    %430 = vmatpush.bf16.msra.mxu0 %v409
    %431 = vmatpush.bf16.msra.mxu0 %v408
    %432 = vmatmul.bf16.gmra.mxu0 %v355
    %v433 = vpop.f32.mrf.mxu0
    %v434 = vadd.f32 %v374, %v433
    %v435 = vpop.f32.mrf.mxu0
    %v436 = vadd.f32 %v374, %v435
    %437 = vdwg.mxu0
    %438 = vst [vmem:[#allocation10] sm:$0xff] %v434
    %439 = vst [vmem:[#allocation10 + $0x8] sm:$0xff] %v436
    // Predicated region
    $region38: #{tpu_custom_call.1} parent=1 // pred_check
      _
    $region39: #{tpu_custom_call.1} parent=1 // pred_check_branch
      %441 = sbr.rel (0) target = $region41
    $region40: #{tpu_custom_call.1} parent=1 // pred_region
      %443 = vsyncadd [#allocation4], 0
      %s444 = sshll.u32 [#allocation10], 4
      %s445 = int_to_ptr.vmem [resolvable:$true] %s444
      %s446 = sshll.u32 %s5, 4
      %s447 = int_to_ptr.hbm [resolvable:$true] %s446
      %452 = dma.vmem_to_hbm [thread:$0]  %s445, 256, %s447, [#allocation4], 128, 128, 8
    $region41: #{tpu_custom_call.1} parent=1 // pred_fallthru
      _
    // Predicated region
    $region42: #{tpu_custom_call.1} parent=1 // pred_check
      _
    $region43: #{tpu_custom_call.1} parent=1 // pred_check_branch
      %454 = sbr.rel (0) target = $region45
    $region44: #{tpu_custom_call.1} parent=1 // pred_region
      %456 = dma.done [#allocation4], 256
    $region45: #{tpu_custom_call.1} parent=1 // pred_fallthru
      _
    %457 = vsyncpa [#allocation3], 1
    %458 = vsyncpa [#allocation6], 1
    %459 = vsyncpa [#allocation9], 1
    %460 = vsyncpa [#allocation4], 1

</llo_original>
